<compile_context>
chip_gen: v6e
topology: v6e:2x2x1
jax: 0.10.0
libtpu: 0.0.40
codegen_flags: <defaults>
</compile_context>

<pallas_src>
import functools

import jax
import jax.numpy as jnp
from jax.experimental import pallas as pl
from jax.experimental.pallas import tpu as pltpu


def _ce_partial_kernel(x_ref, t_ref, out_ref, *, hw_total, tile_hw,
                       tiles_per_split, any_masking):
    """One (C, tile_hw) tile of logits for one (batch, hw-split) pair.

    x_ref:   (C, tile_hw)  logits (classes on sublanes, pixels on lanes)
    t_ref:   (1, tile_hw)  int32 labels in 1..8
    out_ref: (1, tile_hw)  f32 per-lane partial NLL sum, resident across the
                           innermost (reduction) grid axis.
    """
    h = pl.program_id(1)   # hw-split index
    j = pl.program_id(2)   # tile index within the split (reduction axis)

    @pl.when(j == 0)
    def _():
        out_ref[...] = jnp.zeros_like(out_ref)

    x = x_ref[...].astype(jnp.float32)            # (C, T)
    t = t_ref[...] - 1                            # (1, T), labels 1..8 -> 0..7

    # log-softmax normalizer per pixel (reduce over the class / sublane axis)
    m = jnp.max(x, axis=0, keepdims=True)                                 # (1, T)
    lse = m + jnp.log(jnp.sum(jnp.exp(x - m), axis=0, keepdims=True))     # (1, T)
    # TODO(synk): on v6e/v7x a bf16 exp would relieve the EUP (~1.3-1.7x) but
    # costs ~1e-3 rel precision; kept f32 to match the strict reference check.

    # gather the logit at the target class via one-hot select over sublanes
    cls = jax.lax.broadcasted_iota(jnp.int32, x.shape, 0)                 # (C, T)
    picked = jnp.sum(jnp.where(cls == t, x, 0.0), axis=0, keepdims=True)  # (1, T)

    nll = lse - picked                                                    # (1, T)

    if any_masking:
        g = h * tiles_per_split + j        # global tile index (scalar)
        is_partial = (g + 1) * tile_hw > hw_total

        @pl.when(jnp.logical_not(is_partial))
        def _():
            out_ref[...] += nll

        @pl.when(is_partial)
        def _():
            # mask out-of-range pixels of the (padded) tail / phantom tile;
            # jnp.where selects (does not multiply), so padded NaN/Inf is safe.
            pos = g * tile_hw + jax.lax.broadcasted_iota(jnp.int32, nll.shape, 1)
            out_ref[...] += jnp.where(pos < hw_total, nll, 0.0)
    else:
        out_ref[...] += nll


def weighted_cross_entropy_loss(inputs_nchw, targets_nhw, *,
                                max_tile_hw=32768, hw_splits=None):
    """inputs_nchw: (N, C, H, W) float logits; targets_nhw: (N, H, W) int labels in 1..8.

    Returns scalar mean cross-entropy, matching nn.CrossEntropyLoss()(inputs, targets - 1).
    """
    N, C, H, W = inputs_nchw.shape
    HW = H * W

    # Free reshapes only (no transpose, no extra HBM pass).
    x = inputs_nchw.reshape(N, C, HW)
    t = targets_nhw.reshape(N, 1, HW).astype(jnp.int32)

    # Lane-dense tile (multiple of 128) sized from a conservative VMEM budget:
    # ~(2*C*4 + 2*4 + 2*4 + ~128) bytes/pixel  =>  32768 px ~ 8-9 MiB, fits
    # v5e's 16 MiB default scoped VMEM and v7x's 32 MiB default with headroom.
    if HW >= 128:
        tile = min(max_tile_hw, (HW // 128) * 128)
    else:
        tile = HW  # last block dim equals full array dim -> still legal
    n_hw_tiles = pl.cdiv(HW, tile)

    # Second parallel grid axis over HW so both v7x TensorCores get work even
    # for N == 1.  Only split when it is free (even tile count) or when N == 1
    # (where the megacore win dwarfs one masked phantom step).
    if hw_splits is None:
        hw_splits = 2 if (n_hw_tiles >= 2 and (n_hw_tiles % 2 == 0 or N == 1)) else 1
    tiles_per_split = pl.cdiv(n_hw_tiles, hw_splits)
    has_phantom = tiles_per_split * hw_splits != n_hw_tiles
    any_masking = has_phantom or (HW % tile != 0)

    def _hw_block(n, h, j):
        g = h * tiles_per_split + j
        if has_phantom:
            g = jnp.minimum(g, n_hw_tiles - 1)  # phantom step re-reads last block, fully masked
        return (n, 0, g)

    kernel = functools.partial(
        _ce_partial_kernel,
        hw_total=HW, tile_hw=tile,
        tiles_per_split=tiles_per_split, any_masking=any_masking,
    )

    partial_nll = pl.pallas_call(
        kernel,
        out_shape=jax.ShapeDtypeStruct((N, 1, hw_splits * tile), jnp.float32),
        grid_spec=pltpu.PrefetchScalarGridSpec(
            num_scalar_prefetch=0,
            grid=(N, hw_splits, tiles_per_split),
            in_specs=[
                # logits: (N, C, HW), kernel sees (C, tile)
                pl.BlockSpec((None, C, tile), _hw_block),
                # targets: (N, 1, HW), kernel sees (1, tile)
                pl.BlockSpec((None, 1, tile), _hw_block),
            ],
            # per-(batch, split) partial-sum row, resident across the reduction axis
            out_specs=pl.BlockSpec((None, 1, tile), lambda n, h, j: (n, 0, h)),
        ),
        compiler_params=pltpu.CompilerParams(
            dimension_semantics=("parallel", "parallel", "arbitrary")
        ),
    )(x, t)

    # Single tiny cross-lane reduce + mean in the wrapper.
    return jnp.sum(partial_nll) / jnp.float32(N * HW)


def _reference_loss(inputs_nchw, targets_nhw):
    # Pure-JAX reference of nn.CrossEntropyLoss()(inputs, targets - 1)
    N, C, H, W = inputs_nchw.shape
    x = jnp.transpose(inputs_nchw, (0, 2, 3, 1)).reshape(-1, C).astype(jnp.float32)
    t = targets_nhw.reshape(-1).astype(jnp.int32) - 1
    logp = jax.nn.log_softmax(x, axis=-1)
    nll = -jnp.take_along_axis(logp, t[:, None], axis=-1)[:, 0]
    return jnp.mean(nll)


if __name__ == "__main__":
    key = jax.random.PRNGKey(0)

    # Case 1: small, even shape (8 classes, labels 1..8)
    k1, k2, k3, k4 = jax.random.split(key, 4)
    N, C, H, W = 2, 8, 16, 16
    inputs = jax.random.normal(k1, (N, C, H, W), dtype=jnp.float32)
    targets = jax.random.randint(k2, (N, H, W), minval=1, maxval=9, dtype=jnp.int32)
    loss = jax.block_until_ready(weighted_cross_entropy_loss(inputs, targets))
    ref = jax.block_until_ready(_reference_loss(inputs, targets))
    assert jnp.allclose(loss, ref, rtol=1e-5, atol=1e-5), (loss, ref)

    # Case 2: H*W not a multiple of the tile -> exercises hw split + tail mask
    H2, W2 = 24, 24
    inputs2 = jax.random.normal(k3, (N, C, H2, W2), dtype=jnp.float32)
    targets2 = jax.random.randint(k4, (N, H2, W2), minval=1, maxval=9, dtype=jnp.int32)
    loss2 = jax.block_until_ready(weighted_cross_entropy_loss(inputs2, targets2))
    ref2 = jax.block_until_ready(_reference_loss(inputs2, targets2))
    assert jnp.allclose(loss2, ref2, rtol=1e-5, atol=1e-5), (loss2, ref2)

    print("KERNEL_OK")
</pallas_src>

<mosaic_0001>
module attributes {stable_mosaic.version = 11 : i64} {
  func.func @_ce_partial_kernel(%arg0: i32, %arg1: i32, %arg2: i32, %arg3: memref<1x8x256xf32, #tpu.memory_space<vmem>>, %arg4: memref<1x1x256xi32, #tpu.memory_space<vmem>>, %arg5: memref<1x1x256xf32, #tpu.memory_space<vmem>>) attributes {dimension_semantics = [#tpu.dimension_semantics<parallel>, #tpu.dimension_semantics<parallel>, #tpu.dimension_semantics<arbitrary>], iteration_bounds = array<i64: 2, 1, 1>, scalar_prefetch = 0 : i64, scratch_operands = 0 : i64, tpu.core_type = #tpu.core_type<tc>, window_params = [{transform_indices = @transform_0, window_bounds = array<i64: 1, 8, 256>}, {transform_indices = @transform_1, window_bounds = array<i64: 1, 1, 256>}, {transform_indices = @transform_2, window_bounds = array<i64: 1, 1, 256>}]} {
    %c0_i32 = arith.constant 0 : i32
    %0 = arith.cmpi eq, %arg2, %c0_i32 : i32
    %1 = arith.extui %0 : i1 to i32
    %c0_i32_0 = arith.constant 0 : i32
    %2 = arith.cmpi ne, %1, %c0_i32_0 : i32
    scf.if %2 {
      %cst_15 = arith.constant 0.000000e+00 : f32
      %32 = vector.broadcast %cst_15 : f32 to vector<1x256xf32>
      %c0_16 = arith.constant 0 : index
      %c0_17 = arith.constant 0 : index
      %c0_18 = arith.constant 0 : index
      %33 = vector.load %arg5[%c0_16, %c0_17, %c0_18] : memref<1x1x256xf32, #tpu.memory_space<vmem>>, vector<1x1x256xf32>
      %34 = vector.shape_cast %33 : vector<1x1x256xf32> to vector<1x256xf32>
      %35 = vector.shape_cast %32 : vector<1x256xf32> to vector<1x1x256xf32>
      tpu.vector_store %arg5[%c0_16, %c0_17, %c0_18], %35 {strides = array<i32>} : memref<1x1x256xf32, #tpu.memory_space<vmem>>, vector<1x1x256xf32>,
    } else {
    }
    %c0 = arith.constant 0 : index
    %c0_1 = arith.constant 0 : index
    %c0_2 = arith.constant 0 : index
    %3 = vector.load %arg3[%c0, %c0_1, %c0_2] : memref<1x8x256xf32, #tpu.memory_space<vmem>>, vector<1x8x256xf32>
    %4 = vector.shape_cast %3 : vector<1x8x256xf32> to vector<8x256xf32>
    %c0_3 = arith.constant 0 : index
    %c0_4 = arith.constant 0 : index
    %c0_5 = arith.constant 0 : index
    %5 = vector.load %arg4[%c0_3, %c0_4, %c0_5] : memref<1x1x256xi32, #tpu.memory_space<vmem>>, vector<1x1x256xi32>
    %6 = vector.shape_cast %5 : vector<1x1x256xi32> to vector<1x256xi32>
    %c1_i32 = arith.constant 1 : i32
    %7 = vector.broadcast %c1_i32 : i32 to vector<1x256xi32>
    %8 = arith.subi %6, %7 : vector<1x256xi32>
    %cst = arith.constant dense<0xFF800000> : vector<256xf32>
    %9 = vector.multi_reduction <maximumf>, %4, %cst [0] : vector<8x256xf32> to vector<256xf32>
    %10 = vector.shape_cast %9 : vector<256xf32> to vector<1x256xf32>
    %11 = vector.broadcast %10 : vector<1x256xf32> to vector<8x256xf32>
    %12 = arith.subf %4, %11 : vector<8x256xf32>
    %13 = math.exp %12 : vector<8x256xf32>
    %cst_6 = arith.constant dense<0.000000e+00> : vector<256xf32>
    %14 = vector.multi_reduction <add>, %13, %cst_6 [0] : vector<8x256xf32> to vector<256xf32>
    %15 = vector.shape_cast %14 : vector<256xf32> to vector<1x256xf32>
    %16 = math.log %15 : vector<1x256xf32>
    %17 = arith.addf %10, %16 : vector<1x256xf32>
    %18 = tpu.iota {dimensions = array<i32: 0>} : vector<8x256xi32>
    %19 = vector.broadcast %8 : vector<1x256xi32> to vector<8x256xi32>
    %20 = arith.cmpi eq, %18, %19 : vector<8x256xi32>
    %cst_7 = arith.constant 0.000000e+00 : f32
    %21 = vector.broadcast %cst_7 : f32 to vector<8x256xf32>
    %22 = arith.select %20, %4, %21 : vector<8x256xi1>, vector<8x256xf32>
    %cst_8 = arith.constant dense<0.000000e+00> : vector<256xf32>
    %23 = vector.multi_reduction <add>, %22, %cst_8 [0] : vector<8x256xf32> to vector<256xf32>
    %24 = vector.shape_cast %23 : vector<256xf32> to vector<1x256xf32>
    %25 = arith.subf %17, %24 : vector<1x256xf32>
    %c0_9 = arith.constant 0 : index
    %c0_10 = arith.constant 0 : index
    %c0_11 = arith.constant 0 : index
    %26 = vector.load %arg5[%c0_9, %c0_10, %c0_11] : memref<1x1x256xf32, #tpu.memory_space<vmem>>, vector<1x1x256xf32>
    %27 = vector.shape_cast %26 : vector<1x1x256xf32> to vector<1x256xf32>
    %28 = arith.addf %27, %25 : vector<1x256xf32>
    %c0_12 = arith.constant 0 : index
    %c0_13 = arith.constant 0 : index
    %c0_14 = arith.constant 0 : index
    %29 = vector.load %arg5[%c0_12, %c0_13, %c0_14] : memref<1x1x256xf32, #tpu.memory_space<vmem>>, vector<1x1x256xf32>
    %30 = vector.shape_cast %29 : vector<1x1x256xf32> to vector<1x256xf32>
    %31 = vector.shape_cast %28 : vector<1x256xf32> to vector<1x1x256xf32>
    tpu.vector_store %arg5[%c0_12, %c0_13, %c0_14], %31 {strides = array<i32>} : memref<1x1x256xf32, #tpu.memory_space<vmem>>, vector<1x1x256xf32>,
    return
  }
  func.func @transform_0(%arg0: i32, %arg1: i32, %arg2: i32) -> (i32, i32, i32) {
    %c1_i32 = arith.constant 1 : i32
    %0 = arith.muli %arg1, %c1_i32 : i32
    %1 = arith.addi %0, %arg2 : i32
    %c0_i32 = arith.constant 0 : i32
    %c0_i32_0 = arith.constant 0 : i32
    return %arg0, %c0_i32, %1 : i32, i32, i32
  }
  func.func @transform_1(%arg0: i32, %arg1: i32, %arg2: i32) -> (i32, i32, i32) {
    %c1_i32 = arith.constant 1 : i32
    %0 = arith.muli %arg1, %c1_i32 : i32
    %1 = arith.addi %0, %arg2 : i32
    %c0_i32 = arith.constant 0 : i32
    %c0_i32_0 = arith.constant 0 : i32
    return %arg0, %c0_i32, %1 : i32, i32, i32
  }
  func.func @transform_2(%arg0: i32, %arg1: i32, %arg2: i32) -> (i32, i32, i32) {
    %c0_i32 = arith.constant 0 : i32
    %c0_i32_0 = arith.constant 0 : i32
    return %arg0, %c0_i32, %arg1 : i32, i32, i32
  }
}

</mosaic_0001>

<llo_original>
// kernel: tpu_custom_call.1
$region0: #{tpu_custom_call.1}
  #allocation0 [shape = 'u32[]', space=smem, size = 0x4, offset = 0x4, fixed_abs, tag = 'smem constant byte address 0x4 - core index']
  #allocation1 [shape = 'u32[144,128]{1,0:T(1,128)}', space=vmem, size = 0x12000, scoped, tag = 'internal scratch']
  %s0 = inlined_call_operand.hbm [shape: f32[2,8,256], index: 0, kind: input, shape index: {}]
  %s1 = inlined_call_operand.hbm [shape: s32[2,1,256], index: 1, kind: input, shape index: {}]
  %s2 = inlined_call_operand.hbm [shape: f32[2,1,256], index: 2, kind: output, shape index: {}]
  %s3 = sld [smem:[#allocation0]]
  $region53: #{tpu_custom_call.1} parent=0
    _
  %s5 = ssub.s32 1, %s3
  %s6 = scalar_select 0, %s5, %s3
  $region1: #{tpu_custom_call.1} parent=0
    #allocation2 [shape = 'u8[16384]{0}', space=vmem, size = 0x4000, scoped, tag = 'input window, operand 0']
    #allocation3 [shape = 's32[2]{0}', space=sflag, size = 0x8, scoped, tag = 'scoped memory for tpu_custom_call.1']
    #allocation4 [shape = 's32[2]{0}', space=sflag, size = 0x8, scoped, tag = 'scoped memory for tpu_custom_call.1']
    #allocation5 [shape = 'u8[2048]{0}', space=vmem, size = 0x800, scoped, tag = 'input window, operand 1']
    #allocation6 [shape = 's32[2]{0}', space=sflag, size = 0x8, scoped, tag = 'scoped memory for tpu_custom_call.1']
    #allocation7 [shape = 'u8[2048]{0}', space=vmem, size = 0x800, scoped, tag = 'output window, operand 0']
    %7 = vsyncpa [#allocation3], 0
    %s8 = scalar_lea.sflag [#allocation3], 1
    %9 = vsyncpa %s8, 0
    %10 = vsyncpa [#allocation6], 0
    %s11 = scalar_lea.sflag [#allocation6], 1
    %12 = vsyncpa %s11, 0
    %13 = vsyncpa [#allocation4], 0
    %s14 = scalar_lea.sflag [#allocation4], 1
    %15 = vsyncpa %s14, 0
    loop: start=0, step=1, limit=4
    $region2: #{tpu_custom_call.1} parent=1 // loop_pre_header
      _
    $region3: #{tpu_custom_call.1} parent=1 // loop_header
      %s17 = sphi 0, %s21
      %p18 = scmp.ge.s32.totalorder %s17, 4
      %s24 = sphi 0, %s43
      %s25 = sphi 0, %s39
      %s26 = sphi 0, %s35
      %s27 = sphi 0, %s24
      %s28 = sphi 0, %s25
      %s29 = sphi 0, %s26
      %s30 = sphi 0, %s27
      %s31 = sphi 0, %s28
      %s32 = sphi 0, %s29
      %s50 = sphi 0, %s52
      %s53 = sphi 0, %s50
      %s54 = sphi 0, %s53
      %s70 = sphi 0, %s54
      %s80 = sphi 0, %s82
      %s83 = sphi 0, %s80
      %s84 = sphi 0, %s83
      %s100 = sphi 0, %s84
      %s108 = sphi 0, %s110
      %s111 = sphi 0, %s108
      %s112 = sphi 0, %s111
      %s128 = sphi 0, %s112
    $region4: #{tpu_custom_call.1} parent=1 // loop_header_branch
      %20 = sbr.rel (%p18) target = $region8
    $region5: #{tpu_custom_call.1} parent=1 // loop_body
      %s22 = ssub.s32 %s17, 1
      %s23 = ssub.s32 %s17, 2
      %s33 = sadd.s32 1, %s26
      %p34 = scmp.ge.s32.totalorder %s33, 1
      %s35 = scalar_select %p34, 0, %s33
      %s36 = sadd.s32 1, %s25
      %s37 = scalar_select %p34, %s36, %s25
      %p38 = scmp.ge.s32.totalorder %s37, 1
      %s39 = scalar_select %p38, 0, %s37
      %s40 = sadd.s32 1, %s24
      %s41 = scalar_select %p38, %s40, %s24
      %p42 = scmp.ge.s32.totalorder %s41, 2
      %s43 = scalar_select %p42, 0, %s41
      %s44 = sadd.s32 %s25, %s26
      %s45 = sadd.s32 %s39, %s35
      %s46 = ssub.s32 %s24, %s43
      %s47 = ssub.s32 %s44, %s45
      %s48 = sor.u32 %s46, %s47
      %p49 = scmp.eq.s32.totalorder %s48, 0
      %s51 = sadd.s32 %s50, 1
      %s52 = scalar_select %p49, %s50, %s51
      %p55 = pneg %p49
      %p56 = scmp.eq.s32.totalorder %s17, 1
      %p57 = por %p55, %p56
      %p58 = scmp.ne.s32.totalorder %s50, %s53
      %p59 = scmp.eq.s32.totalorder %s17, 0
      %p60 = por %p58, %p59
      %p61 = scmp.ne.s32.totalorder %s50, %s53
      %p62 = scmp.eq.s32.totalorder %s22, 1
      %p63 = por %p61, %p62
      %p64 = scmp.ne.s32.totalorder %s53, %s54
      %p65 = scmp.eq.s32.totalorder %s22, 0
      %p66 = por %p64, %p65
      %p67 = scmp.ne.s32.totalorder %s53, %s54
      %p68 = scmp.eq.s32.totalorder %s23, 1
      %p69 = por %p67, %p68
      %p71 = scmp.ne.s32.totalorder %s54, %s70
      %p72 = scmp.eq.s32.totalorder %s23, 0
      %p73 = por %p71, %p72
      %s74 = sadd.s32 %s25, %s26
      %s75 = sadd.s32 %s39, %s35
      %s76 = ssub.s32 %s24, %s43
      %s77 = ssub.s32 %s74, %s75
      %s78 = sor.u32 %s76, %s77
      %p79 = scmp.eq.s32.totalorder %s78, 0
      %s81 = sadd.s32 %s80, 1
      %s82 = scalar_select %p79, %s80, %s81
      %p85 = pneg %p79
      %p86 = scmp.eq.s32.totalorder %s17, 1
      %p87 = por %p85, %p86
      %p88 = scmp.ne.s32.totalorder %s80, %s83
      %p89 = scmp.eq.s32.totalorder %s17, 0
      %p90 = por %p88, %p89
      %p91 = scmp.ne.s32.totalorder %s80, %s83
      %p92 = scmp.eq.s32.totalorder %s22, 1
      %p93 = por %p91, %p92
      %p94 = scmp.ne.s32.totalorder %s83, %s84
      %p95 = scmp.eq.s32.totalorder %s22, 0
      %p96 = por %p94, %p95
      %p97 = scmp.ne.s32.totalorder %s83, %s84
      %p98 = scmp.eq.s32.totalorder %s23, 1
      %p99 = por %p97, %p98
      %p101 = scmp.ne.s32.totalorder %s84, %s100
      %p102 = scmp.eq.s32.totalorder %s23, 0
      %p103 = por %p101, %p102
      %s104 = ssub.s32 %s24, %s43
      %s105 = ssub.s32 %s25, %s39
      %s106 = sor.u32 %s104, %s105
      %p107 = scmp.eq.s32.totalorder %s106, 0
      %s109 = sadd.s32 %s108, 1
      %s110 = scalar_select %p107, %s108, %s109
      %p113 = pneg %p107
      %p114 = scmp.eq.s32.totalorder %s17, 1
      %p115 = por %p113, %p114
      %p116 = scmp.ne.s32.totalorder %s108, %s111
      %p117 = scmp.eq.s32.totalorder %s17, 0
      %p118 = por %p116, %p117
      %p119 = scmp.ne.s32.totalorder %s108, %s111
      %p120 = scmp.eq.s32.totalorder %s22, 1
      %p121 = por %p119, %p120
      %p122 = scmp.ne.s32.totalorder %s111, %s112
      %p123 = scmp.eq.s32.totalorder %s22, 0
      %p124 = por %p122, %p123
      %p125 = scmp.ne.s32.totalorder %s111, %s112
      %p126 = scmp.eq.s32.totalorder %s23, 1
      %p127 = por %p125, %p126
      %p129 = scmp.ne.s32.totalorder %s112, %s128
      %p130 = scmp.eq.s32.totalorder %s23, 0
      %p131 = por %p129, %p130
      %p132 = scmp.le.s32.totalorder 1, %s17
      %p133 = scmp.lt.s32.totalorder %s17, 3
      %p134 = pnand %p132, %p133
      %p135 = pneg %p134
      // Predicated region
      $region9: #{tpu_custom_call.1} parent=5 // pred_check
        _
      $region10: #{tpu_custom_call.1} parent=5 // pred_check_branch
        %137 = sbr.rel (%p134) target = $region12
      $region11: #{tpu_custom_call.1} parent=5 // pred_region
        %s138 = ssub.s32 %s17, 1
      $region12: #{tpu_custom_call.1} parent=5 // pred_fallthru
        _
      %p139 = scmp.lt.s32.totalorder %s17, 2
      // Predicated region
      $region13: #{tpu_custom_call.1} parent=5 // pred_check
        %p140 = pneg %p139
      $region14: #{tpu_custom_call.1} parent=5 // pred_check_branch
        %142 = sbr.rel (%p140) target = $region16
      $region15: #{tpu_custom_call.1} parent=5 // pred_region
        // Predicated region
        $region17: #{tpu_custom_call.1} parent=15 // pred_check
          %p143 = pneg %p60
        $region18: #{tpu_custom_call.1} parent=15 // pred_check_branch
          %145 = sbr.rel (%p143) target = $region20
        $region19: #{tpu_custom_call.1} parent=15 // pred_region
          %s146 = sand.u32 %s50, 1
          %s147 = scalar_lea.sflag [#allocation3], %s146
          %s148 = sand.u32 %s50, 1
          %s149 = smul.addr %s148, 16
          %s150 = scalar_lea.vmem [#allocation2], %s149
          %s151 = sadd.s32 %s25, %s26
          %s152 = smul.u32 2, %s151
          %s154 = ssub.s32 256, 256
          %155 = vsyncadd %s147, %s154
          %s156 = smul.addr %s24, 2
          %s157 = sadd.s32 %s152, %s156
          %s158 = smul.addr %s157, 128
          %s159 = scalar_lea.hbm %s0, %s158
          %s161 = sshll.u32 %s150, 4
          %s162 = int_to_ptr.vmem [resolvable:$true] %s161
          %164 = dma.hbm_to_vmem [thread:$0]  %s159, 256, %s162, %s147
        $region20: #{tpu_custom_call.1} parent=15 // pred_fallthru
          _
        // Predicated region
        $region21: #{tpu_custom_call.1} parent=15 // pred_check
          %p165 = pneg %p90
        $region22: #{tpu_custom_call.1} parent=15 // pred_check_branch
          %167 = sbr.rel (%p165) target = $region24
        $region23: #{tpu_custom_call.1} parent=15 // pred_region
          %s168 = sand.u32 %s80, 1
          %s169 = scalar_lea.sflag [#allocation6], %s168
          %s170 = sand.u32 %s80, 1
          %s171 = smul.addr %s170, 2
          %s172 = scalar_lea.vmem [#allocation5], %s171
          %s173 = sadd.s32 %s25, %s26
          %s174 = smul.u32 2, %s173
          %s176 = ssub.s32 32, 32
          %177 = vsyncadd %s169, %s176
          %s178 = smul.addr %s24, 2
          %s179 = sadd.s32 %s174, %s178
          %s180 = smul.addr %s179, 16
          %s181 = scalar_lea.hbm %s1, %s180
          %s183 = sshll.u32 %s172, 4
          %s184 = int_to_ptr.vmem [resolvable:$true] %s183
          %186 = dma.hbm_to_vmem [thread:$0]  %s181, 32, %s184, %s169
        $region24: #{tpu_custom_call.1} parent=15 // pred_fallthru
          _
      $region16: #{tpu_custom_call.1} parent=5 // pred_fallthru
        _
      %p187 = scmp.le.s32.totalorder 1, %s17
      %p188 = scmp.lt.s32.totalorder %s17, 3
      %p189 = pnand %p187, %p188
      %p190 = pneg %p189
      // Predicated region
      $region25: #{tpu_custom_call.1} parent=5 // pred_check
        _
      $region26: #{tpu_custom_call.1} parent=5 // pred_check_branch
        %192 = sbr.rel (%p189) target = $region28
      $region27: #{tpu_custom_call.1} parent=5 // pred_region
        %s193 = ssub.s32 %s17, 1
        %s194 = sand.u32 %s53, 1
        %s195 = scalar_lea.sflag [#allocation3], %s194
        %s196 = sand.u32 %s53, 1
        %s197 = smul.addr %s196, 16
        %s198 = scalar_lea.vmem [#allocation2], %s197
        // Predicated region
        $region29: #{tpu_custom_call.1} parent=27 // pred_check
          %p199 = pneg %p66
        $region30: #{tpu_custom_call.1} parent=27 // pred_check_branch
          %201 = sbr.rel (%p199) target = $region32
        $region31: #{tpu_custom_call.1} parent=27 // pred_region
          %202 = dma.done %s195, 256
        $region32: #{tpu_custom_call.1} parent=27 // pred_fallthru
          _
        %s203 = sand.u32 %s83, 1
        %s204 = scalar_lea.sflag [#allocation6], %s203
        %s205 = sand.u32 %s83, 1
        %s206 = smul.addr %s205, 2
        %s207 = scalar_lea.vmem [#allocation5], %s206
        // Predicated region
        $region33: #{tpu_custom_call.1} parent=27 // pred_check
          %p208 = pneg %p96
        $region34: #{tpu_custom_call.1} parent=27 // pred_check_branch
          %210 = sbr.rel (%p208) target = $region36
        $region35: #{tpu_custom_call.1} parent=27 // pred_region
          %211 = dma.done %s204, 32
        $region36: #{tpu_custom_call.1} parent=27 // pred_fallthru
          _
        %s212 = sand.u32 %s53, 1
        %s213 = scalar_lea.sflag [#allocation3], %s212
        %s214 = sand.u32 %s53, 1
        %s215 = smul.addr %s214, 16
        %s216 = scalar_lea.vmem [#allocation2], %s215
        %p217 = pneg %p66
        %p218 = pneg %p63
        %s219 = sand.u32 %s83, 1
        %s220 = scalar_lea.sflag [#allocation6], %s219
        %s221 = sand.u32 %s83, 1
        %s222 = smul.addr %s221, 2
        %s223 = scalar_lea.vmem [#allocation5], %s222
        %p224 = pneg %p96
        %p225 = pneg %p93
        %p226 = pneg %p124
        %p227 = pneg %p121
        %s228 = sand.u32 %s111, 1
        %s229 = scalar_lea.sflag [#allocation4], %s228
        %s230 = sand.u32 %s111, 1
        %s231 = smul.addr %s230, 2
        %s232 = scalar_lea.vmem [#allocation7], %s231
        %s233 = sadd.s32 %s28, %s29
        %s234 = smul.u32 2, %s233
        %s235 = sadd.s32 %s28, %s29
        %s236 = smul.u32 2, %s235
        %s237 = smul.u32 2, %s28
        %p238 = scmp.eq.s32.totalorder %s29, 0
        // Predicated region
        $region37: #{tpu_custom_call.1} parent=27 // pred_check
          %p239 = pneg %p238
        $region38: #{tpu_custom_call.1} parent=27 // pred_check_branch
          %241 = sbr.rel (%p239) target = $region40
        $region39: #{tpu_custom_call.1} parent=27 // pred_region
          %v242 = vlaneseq
          %vm243 = vcmp.ge.s32.totalorder %v242, 0
          %vm244 = vcmp.lt.s32.totalorder %v242, 256
          %vm245 = vmand %vm243, %vm244
          %246 = vst.msk [vmem:[%s232] sm:$0x3] %vm245, 0.0
        $region40: #{tpu_custom_call.1} parent=27 // pred_fallthru
          _
        %v247 = vld [vmem:[%s198] sm:$0xff]
        %v248 = vld [vmem:[%s198 + $0x8] sm:$0xff]
        %v249 = vld [vmem:[%s207] sm:$0x3]
        %v250 = vsub.s32 %v249, 1
        %v251 = vrot.slane %v247, 4
        %v252 = vmax.f32 %v247, %v251
        %v253 = vrot.slane %v252, 2
        %v254 = vmax.f32 %v252, %v253
        %v255 = vrot.slane %v254, 1
        %v256 = vmax.f32 %v254, %v255
        %v257 = vrot.slane %v248, 4
        %v258 = vmax.f32 %v248, %v257
        %v259 = vrot.slane %v258, 2
        %v260 = vmax.f32 %v258, %v259
        %v261 = vrot.slane %v260, 1
        %v262 = vmax.f32 %v260, %v261
        %v263 = vsub.f32 %v247, %v256
        %v264 = vsub.f32 %v248, %v262
        %v265 = vmul.f32 %v263, 1.442695
        %v266 = vpow.pop %v265
        %v267 = vmul.f32 %v264, 1.442695
        %v268 = vpow.pop %v267
        %v269 = vrot.slane %v266, 4
        %v270 = vadd.f32 %v266, %v269
        %v271 = vrot.slane %v270, 2
        %v272 = vadd.f32 %v270, %v271
        %v273 = vrot.slane %v272, 1
        %v274 = vadd.f32 %v272, %v273
        %v275 = vrot.slane %v268, 4
        %v276 = vadd.f32 %v268, %v275
        %v277 = vrot.slane %v276, 2
        %v278 = vadd.f32 %v276, %v277
        %v279 = vrot.slane %v278, 1
        %v280 = vadd.f32 %v278, %v279
        %v281 = vlog2.pop %v274
        %v282 = vmul.f32 %v281, 0.6931472
        %v283 = vlog2.pop %v280
        %v284 = vmul.f32 %v283, 0.6931472
        %v285 = vadd.f32 %v256, %v282
        %v286 = vadd.f32 %v262, %v284
        %v287 = vlaneseq
        %v288 = vshrl.u32 %v287, 7
        %v289 = vlaneseq
        %v290 = vshrl.u32 %v289, 7
        %v291 = vsub.s32 0, %v290
        %v292 = vrot.slane %v250, %v291
        %v293 = vlaneseq
        %v294 = vshrl.u32 %v293, 7
        %v295 = vsub.s32 1, %v294
        %v296 = vrot.slane %v250, %v295
        %vm297 = vcmp.eq.s32.totalorder %v288, %v292
        %vm298 = vcmp.eq.s32.totalorder %v288, %v296
        %v299 = vsel %vm297, %v247, 0.0
        %v300 = vsel %vm298, %v248, 0.0
        %v301 = vrot.slane %v299, 4
        %v302 = vadd.f32 %v299, %v301
        %v303 = vrot.slane %v302, 2
        %v304 = vadd.f32 %v302, %v303
        %v305 = vrot.slane %v304, 1
        %v306 = vadd.f32 %v304, %v305
        %v307 = vrot.slane %v300, 4
        %v308 = vadd.f32 %v300, %v307
        %v309 = vrot.slane %v308, 2
        %v310 = vadd.f32 %v308, %v309
        %v311 = vrot.slane %v310, 1
        %v312 = vadd.f32 %v310, %v311
        %v313 = vsub.f32 %v285, %v306
        %v314 = vsub.f32 %v286, %v312
        %v315 = vld [vmem:[%s232] sm:$0x3]
        %v318 = vcombine.low %v313, %v314
        %v320 = vunpack.c.l.s4 1966171168
        %v321 = vunpack.c.0.s8 %v320
        %v322 = vlaneseq
        %v323 = vshrl.u32 %v322, 7
        %v324 = vsub.s32 %v321, %v323
        %v325 = vrot.slane %v318, %v324
        %v327 = vunpack.c.l.s4 1966171168
        %v328 = vunpack.c.0.s8 %v327
        %v329 = vlaneseq
        %v330 = vshrl.u32 %v329, 7
        %v331 = vsub.s32 %v328, %v330
        %v332 = vrot.slane %v325, %v331
        %v334 = vadd.f32 %v315, %v332
        %v335 = vlaneseq
        %vm336 = vcmp.ge.s32.totalorder %v335, 0
        %vm337 = vcmp.lt.s32.totalorder %v335, 256
        %vm338 = vmand %vm336, %vm337
        %339 = vst.msk [vmem:[%s232] sm:$0x3] %vm338, %v334
        %s340 = sand.u32 %s111, 1
        %s341 = scalar_lea.sflag [#allocation4], %s340
        %s342 = sand.u32 %s111, 1
        %s343 = smul.addr %s342, 2
        %s344 = scalar_lea.vmem [#allocation7], %s343
        // Predicated region
        $region41: #{tpu_custom_call.1} parent=27 // pred_check
          %p345 = pneg %p121
        $region42: #{tpu_custom_call.1} parent=27 // pred_check_branch
          %347 = sbr.rel (%p345) target = $region44
        $region43: #{tpu_custom_call.1} parent=27 // pred_region
          %s348 = smul.u32 2, %s28
          %s350 = ssub.s32 32, 32
          %351 = vsyncadd %s341, %s350
          %s352 = smul.addr %s27, 2
          %s353 = sadd.s32 %s348, %s352
          %s354 = smul.addr %s353, 16
          %s355 = scalar_lea.hbm %s2, %s354
          %s357 = sshll.u32 %s344, 4
          %s358 = int_to_ptr.vmem [resolvable:$true] %s357
          %360 = dma.vmem_to_hbm [thread:$0]  %s358, 32, %s355, %s341
        $region44: #{tpu_custom_call.1} parent=27 // pred_fallthru
          _
      $region28: #{tpu_custom_call.1} parent=5 // pred_fallthru
        _
      %p361 = scmp.le.s32.totalorder 2, %s17
      // Predicated region
      $region45: #{tpu_custom_call.1} parent=5 // pred_check
        %p362 = pneg %p361
      $region46: #{tpu_custom_call.1} parent=5 // pred_check_branch
        %364 = sbr.rel (%p362) target = $region48
      $region47: #{tpu_custom_call.1} parent=5 // pred_region
        %s365 = ssub.s32 %s17, 2
        // Predicated region
        $region49: #{tpu_custom_call.1} parent=47 // pred_check
          %p366 = pneg %p127
        $region50: #{tpu_custom_call.1} parent=47 // pred_check_branch
          %368 = sbr.rel (%p366) target = $region52
        $region51: #{tpu_custom_call.1} parent=47 // pred_region
          %s369 = sand.u32 %s112, 1
          %s370 = scalar_lea.sflag [#allocation4], %s369
          %s371 = sand.u32 %s112, 1
          %s372 = smul.addr %s371, 2
          %s373 = scalar_lea.vmem [#allocation7], %s372
          %374 = dma.done %s370, 32
        $region52: #{tpu_custom_call.1} parent=47 // pred_fallthru
          _
      $region48: #{tpu_custom_call.1} parent=5 // pred_fallthru
        _
    $region6: #{tpu_custom_call.1} parent=1 // loop_footer
      %s21 = sadd.s32 1, %s17
    $region7: #{tpu_custom_call.1} parent=1 // loop_footer_branch
      %16 = sbr.rel target = $region3
    $region8: #{tpu_custom_call.1} parent=1 // loop_exit
      _
    %375 = vsyncpa [#allocation3], 1
    %s376 = scalar_lea.sflag [#allocation3], 1
    %377 = vsyncpa %s376, 1
    %378 = vsyncpa [#allocation6], 1
    %s379 = scalar_lea.sflag [#allocation6], 1
    %380 = vsyncpa %s379, 1
    %381 = vsyncpa [#allocation4], 1
    %s382 = scalar_lea.sflag [#allocation4], 1
    %383 = vsyncpa %s382, 1

</llo_original>
